<compile_context>
chip_gen: v7x
topology: tpu7x:2x2x1
jax: 0.10.0
libtpu: 0.0.40
codegen_flags: <defaults>
</compile_context>

<pallas_src>
import math

import jax
import jax.numpy as jnp
from jax.experimental import pallas as pl
from jax.experimental.pallas import tpu as pltpu


def _disc_kernel(data_ref, cond_ref, w1_ref, b1_ref, w2_ref, b2_ref, o_ref):
    """sigmoid( tanh([data | cond] @ W1 + b1) @ w2 + b2 ) for one batch tile."""
    # Fused torch.cat + single K=D_in matmul on the MXU, f32 accumulation.
    x = jnp.concatenate([data_ref[...], cond_ref[...]], axis=-1)        # (tile_b, D_in)
    h = jnp.tanh(
        jnp.dot(x, w1_ref[...], preferred_element_type=jnp.float32)
        + b1_ref[...])                                                   # (tile_b, H)

    # Layer 2 as an NT matmul against 8 replicated w2 rows (sublane-aligned M):
    # result (8, tile_b) is lane-dense; row 0 is the logit row.  The +b2 and
    # sigmoid therefore touch ~tile_b/128 dense vregs instead of tile_b
    # single-lane masked ones, and the store is a dense (1, tile_b) row.
    w2_rows = jnp.broadcast_to(w2_ref[...], (8, w2_ref.shape[1]))        # (8, H)
    logits = jax.lax.dot_general(
        w2_rows, h,
        dimension_numbers=(((1,), (1,)), ((), ())),                      # contract H x H
        preferred_element_type=jnp.float32)                              # (8, tile_b)
    logit = logits[0:1, :] + b2_ref[0, 0]                                # (1, tile_b)
    o_ref[...] = jax.nn.sigmoid(logit).astype(o_ref.dtype)


def _round_up(x, m):
    return ((x + m - 1) // m) * m


def _cdiv(a, b):
    return -(-a // b)


def discriminator_forward(data, cond_info, params, *, max_tile_b=4096):
    """Pallas equivalent of Discriminator.forward.

    data      : (B, output_dim)
    cond_info : (B, cond_dim)
    returns   : (B, 1) float32 validity scores.
    """
    w1, b1, w2, b2 = params
    batch, d_data = data.shape
    d_cond = cond_info.shape[1]
    hidden = w1.shape[1]
    d_in = d_data + d_cond
    assert w1.shape[0] == d_in

    # torch does .float() on the concatenated input; mirror it (no-op for f32).
    data = data.astype(jnp.float32)
    cond_info = cond_info.astype(jnp.float32)
    w1f = w1.astype(jnp.float32)
    b1f = b1.reshape(1, hidden).astype(jnp.float32)
    w2_row = w2.reshape(1, hidden).astype(jnp.float32)
    b2f = b2.reshape(1, 1).astype(jnp.float32)

    # Batch tiling: multiples of 128 (lane-dense output row), capped by
    # max_tile_b (lane-padded VMEM footprint), and >= 2 grid steps whenever the
    # batch allows so the "parallel" batch axis can use both v7x TensorCores.
    max_groups = max(1, max_tile_b // 128)
    n_groups = _cdiv(batch, 128)
    groups = min(max_groups, n_groups)
    if n_groups >= 2:
        groups = min(groups, _cdiv(n_groups, 2))
    tile_b = groups * 128
    padded = _round_up(batch, tile_b)
    num_tiles = padded // tile_b
    if padded != batch:
        pad = padded - batch
        data = jnp.pad(data, ((0, pad), (0, 0)))
        cond_info = jnp.pad(cond_info, ((0, pad), (0, 0)))

    cost = pl.CostEstimate(
        flops=2 * padded * hidden * (d_in + 1),
        transcendentals=padded * (hidden + 1),
        bytes_accessed=(padded * (d_in + 1) * 4            # activations in + out
                        + (d_in * hidden + 2 * hidden + 1) * 4),
    )

    out = pl.pallas_call(
        _disc_kernel,
        out_shape=jax.ShapeDtypeStruct((num_tiles, 1, tile_b), jnp.float32),
        grid=(num_tiles,),
        in_specs=[
            pl.BlockSpec((tile_b, d_data), lambda i: (i, 0)),   # data tile (double-buffered)
            pl.BlockSpec((tile_b, d_cond), lambda i: (i, 0)),   # cond tile (double-buffered)
            pl.BlockSpec((d_in, hidden), lambda i: (0, 0)),     # W1 (resident)
            pl.BlockSpec((1, hidden), lambda i: (0, 0)),        # b1
            pl.BlockSpec((1, hidden), lambda i: (0, 0)),        # w2 row
            pl.BlockSpec(memory_space=pltpu.MemorySpace.SMEM),  # b2 scalar in SMEM
        ],
        # Lane-dense output: each grid step writes one dense (1, tile_b) row.
        out_specs=pl.BlockSpec((None, 1, tile_b), lambda i: (i, 0, 0)),
        compiler_params=pltpu.CompilerParams(
            dimension_semantics=("parallel",),          # shard batch grid across TCs (v7x)
            vmem_limit_bytes=32 * 1024 * 1024),         # covers lane-padded tiles on v5e too
        cost_estimate=cost,
    )(data, cond_info, w1f, b1f, w2_row, b2f)

    return out.reshape(padded)[:batch].reshape(batch, 1)


def init_discriminator_params(key, output_dim, cond_dim, hidden=50):
    """Deterministic init matching nn.Linear's default U(-1/sqrt(fan_in), ...)."""
    d_in = output_dim + cond_dim
    k1, k2, k3, k4 = jax.random.split(key, 4)

    bound1 = 1.0 / math.sqrt(d_in)
    w1 = jax.random.uniform(k1, (d_in, hidden), jnp.float32, -bound1, bound1)
    b1 = jax.random.uniform(k2, (1, hidden), jnp.float32, -bound1, bound1)

    bound2 = 1.0 / math.sqrt(hidden)
    w2 = jax.random.uniform(k3, (hidden, 1), jnp.float32, -bound2, bound2)
    b2 = jax.random.uniform(k4, (1, 1), jnp.float32, -bound2, bound2)
    return (w1, b1, w2, b2)


if __name__ == "__main__":
    key = jax.random.PRNGKey(0)
    k_data, k_cond, k_params = jax.random.split(key, 3)

    batch, output_dim, cond_dim = 37, 16, 8   # non-multiple-of-128 batch exercises padding
    data = jax.random.normal(k_data, (batch, output_dim), jnp.float32)
    cond_info = jax.random.normal(k_cond, (batch, cond_dim), jnp.float32)
    params = init_discriminator_params(k_params, output_dim, cond_dim)

    w1, b1, w2, b2 = params
    x = jnp.concatenate([data, cond_info], axis=1)
    ref = jax.nn.sigmoid(jnp.tanh(x @ w1 + b1) @ w2 + b2)

    out = discriminator_forward(data, cond_info, params)
    jax.block_until_ready(out)
    assert out.shape == (batch, 1)
    assert jnp.allclose(out, ref, atol=2e-5), "kernel mismatch vs reference"

    # Multi-tile path (grid > 1, parallel batch axis, tail padding).
    batch2 = 300
    data2 = jax.random.normal(k_data, (batch2, output_dim), jnp.float32)
    cond2 = jax.random.normal(k_cond, (batch2, cond_dim), jnp.float32)
    x2 = jnp.concatenate([data2, cond2], axis=1)
    ref2 = jax.nn.sigmoid(jnp.tanh(x2 @ w1 + b1) @ w2 + b2)
    out2 = discriminator_forward(data2, cond2, params, max_tile_b=128)
    jax.block_until_ready(out2)
    assert out2.shape == (batch2, 1)
    assert jnp.allclose(out2, ref2, atol=2e-5), "tiled kernel mismatch vs reference"

    print("KERNEL_OK")
</pallas_src>

<mosaic_0001>
module attributes {stable_mosaic.version = 11 : i64} {
  func.func @_disc_kernel(%arg0: i32, %arg1: memref<128x16xf32, #tpu.memory_space<vmem>>, %arg2: memref<128x8xf32, #tpu.memory_space<vmem>>, %arg3: memref<24x50xf32, #tpu.memory_space<vmem>>, %arg4: memref<1x50xf32, #tpu.memory_space<vmem>>, %arg5: memref<1x50xf32, #tpu.memory_space<vmem>>, %arg6: memref<1x1xf32, #tpu.memory_space<smem>>, %arg7: memref<1x1x128xf32, #tpu.memory_space<vmem>>) attributes {dimension_semantics = [#tpu.dimension_semantics<parallel>], iteration_bounds = array<i64: 1>, scalar_prefetch = 0 : i64, scratch_operands = 0 : i64, tpu.core_type = #tpu.core_type<tc>, window_params = [{transform_indices = @transform_0, window_bounds = array<i64: 128, 16>}, {transform_indices = @transform_1, window_bounds = array<i64: 128, 8>}, {pipeline_mode = #tpu.pipeline_mode<synchronous>, transform_indices = @transform_2, window_bounds = array<i64: 24, 50>}, {pipeline_mode = #tpu.pipeline_mode<synchronous>, transform_indices = @transform_3, window_bounds = array<i64: 1, 50>}, {pipeline_mode = #tpu.pipeline_mode<synchronous>, transform_indices = @transform_4, window_bounds = array<i64: 1, 50>}, {transform_indices = @transform_5, window_bounds = array<i64: 1, 1>}, {transform_indices = @transform_6, window_bounds = array<i64: 1, 1, 128>}]} {
    %c0 = arith.constant 0 : index
    %c0_0 = arith.constant 0 : index
    %0 = vector.load %arg1[%c0, %c0_0] : memref<128x16xf32, #tpu.memory_space<vmem>>, vector<128x16xf32>
    %c0_1 = arith.constant 0 : index
    %c0_2 = arith.constant 0 : index
    %1 = vector.load %arg2[%c0_1, %c0_2] : memref<128x8xf32, #tpu.memory_space<vmem>>, vector<128x8xf32>
    %2 = tpu.concatenate %0, %1 in 1 : vector<128x16xf32>, vector<128x8xf32> -> vector<128x24xf32>
    %c0_3 = arith.constant 0 : index
    %c0_4 = arith.constant 0 : index
    %3 = vector.load %arg3[%c0_3, %c0_4] : memref<24x50xf32, #tpu.memory_space<vmem>>, vector<24x50xf32>
    %cst = arith.constant dense<0.000000e+00> : vector<128x50xf32>
    %4 = tpu.matmul %2, %3, %cst {dimension_numbers = #tpu.dot_dimension_numbers<[1], [0], [0], [1], [0, 0, 1, 1], [], []>} : vector<128x24xf32>, vector<24x50xf32>, vector<128x50xf32> -> vector<128x50xf32>
    %c0_5 = arith.constant 0 : index
    %c0_6 = arith.constant 0 : index
    %5 = vector.load %arg4[%c0_5, %c0_6] : memref<1x50xf32, #tpu.memory_space<vmem>>, vector<1x50xf32>
    %6 = vector.broadcast %5 : vector<1x50xf32> to vector<128x50xf32>
    %7 = arith.addf %4, %6 : vector<128x50xf32>
    %8 = math.tanh %7 : vector<128x50xf32>
    %c0_7 = arith.constant 0 : index
    %c0_8 = arith.constant 0 : index
    %9 = vector.load %arg5[%c0_7, %c0_8] : memref<1x50xf32, #tpu.memory_space<vmem>>, vector<1x50xf32>
    %10 = vector.shape_cast %9 : vector<1x50xf32> to vector<1x50xf32>
    %11 = vector.broadcast %10 : vector<1x50xf32> to vector<8x50xf32>
    %cst_9 = arith.constant dense<0.000000e+00> : vector<8x128xf32>
    %12 = tpu.matmul %11, %8, %cst_9 {dimension_numbers = #tpu.dot_dimension_numbers<[1], [1], [0], [0], [0, 0, 1, 0], [], []>} : vector<8x50xf32>, vector<128x50xf32>, vector<8x128xf32> -> vector<8x128xf32>
    %13 = vector.extract_strided_slice %12 {offsets = [0, 0], sizes = [1, 128], strides = [1, 1]} : vector<8x128xf32> to vector<1x128xf32>
    %c0_10 = arith.constant 0 : index
    %c0_11 = arith.constant 0 : index
    %14 = memref.load %arg6[%c0_10, %c0_11] : memref<1x1xf32, #tpu.memory_space<smem>>
    %15 = vector.broadcast %14 : f32 to vector<1x128xf32>
    %16 = arith.addf %13, %15 : vector<1x128xf32>
    %17 = arith.negf %16 : vector<1x128xf32>
    %18 = math.exp %17 : vector<1x128xf32>
    %cst_12 = arith.constant 1.000000e+00 : f32
    %19 = vector.broadcast %cst_12 : f32 to vector<1x128xf32>
    %20 = arith.addf %19, %18 : vector<1x128xf32>
    %21 = arith.divf %19, %20 : vector<1x128xf32>
    %c0_13 = arith.constant 0 : index
    %c0_14 = arith.constant 0 : index
    %c0_15 = arith.constant 0 : index
    %22 = vector.load %arg7[%c0_13, %c0_14, %c0_15] : memref<1x1x128xf32, #tpu.memory_space<vmem>>, vector<1x1x128xf32>
    %23 = vector.shape_cast %22 : vector<1x1x128xf32> to vector<1x128xf32>
    %24 = vector.shape_cast %21 : vector<1x128xf32> to vector<1x1x128xf32>
    tpu.vector_store %arg7[%c0_13, %c0_14, %c0_15], %24 {strides = array<i32>} : memref<1x1x128xf32, #tpu.memory_space<vmem>>, vector<1x1x128xf32>,
    return
  }
  func.func @transform_0(%arg0: i32) -> (i32, i32) {
    %c0_i32 = arith.constant 0 : i32
    %c0_i32_0 = arith.constant 0 : i32
    return %arg0, %c0_i32 : i32, i32
  }
  func.func @transform_1(%arg0: i32) -> (i32, i32) {
    %c0_i32 = arith.constant 0 : i32
    %c0_i32_0 = arith.constant 0 : i32
    return %arg0, %c0_i32 : i32, i32
  }
  func.func @transform_2(%arg0: i32) -> (i32, i32) {
    %c0_i32 = arith.constant 0 : i32
    %c0_i32_0 = arith.constant 0 : i32
    %c0_i32_1 = arith.constant 0 : i32
    return %c0_i32, %c0_i32_0 : i32, i32
  }
  func.func @transform_3(%arg0: i32) -> (i32, i32) {
    %c0_i32 = arith.constant 0 : i32
    %c0_i32_0 = arith.constant 0 : i32
    %c0_i32_1 = arith.constant 0 : i32
    return %c0_i32, %c0_i32_0 : i32, i32
  }
  func.func @transform_4(%arg0: i32) -> (i32, i32) {
    %c0_i32 = arith.constant 0 : i32
    %c0_i32_0 = arith.constant 0 : i32
    %c0_i32_1 = arith.constant 0 : i32
    return %c0_i32, %c0_i32_0 : i32, i32
  }
  func.func @transform_5(%arg0: i32) -> (i32, i32) {
    %c0_i32 = arith.constant 0 : i32
    %c0_i32_0 = arith.constant 0 : i32
    %c0_i32_1 = arith.constant 0 : i32
    return %c0_i32, %c0_i32_0 : i32, i32
  }
  func.func @transform_6(%arg0: i32) -> (i32, i32, i32) {
    %c0_i32 = arith.constant 0 : i32
    %c0_i32_0 = arith.constant 0 : i32
    %c0_i32_1 = arith.constant 0 : i32
    return %arg0, %c0_i32, %c0_i32_0 : i32, i32, i32
  }
}

</mosaic_0001>

<llo_original>
// kernel: tpu_custom_call.1
$region0: #{tpu_custom_call.1}
  #allocation0 [shape = 'u32[]', space=smem, size = 0x4, offset = 0x4, fixed_abs, tag = 'smem constant byte address 0x4 - core index']
  #allocation1 [shape = 'u32[144,128]{1,0:T(1,128)}', space=vmem, size = 0x12000, scoped, tag = 'internal scratch']
  #allocation2 [shape = 'f32[1,1]{1,0:T(1,128)S(6)}', space=smem, size = 0x200, scoped, tag = 'scoped memory for tpu_custom_call.1']
  %s0 = inlined_call_operand.vmem [shape: f32[128,16], index: 0, kind: input, shape index: {}]
  %s1 = inlined_call_operand.vmem [shape: f32[128,8], index: 1, kind: input, shape index: {}]
  %s2 = inlined_call_operand.vmem [shape: f32[24,50], index: 2, kind: input, shape index: {}]
  %s3 = inlined_call_operand.vmem [shape: f32[1,50], index: 3, kind: input, shape index: {}]
  %s4 = inlined_call_operand.vmem [shape: f32[1,50], index: 4, kind: input, shape index: {}]
  %s5 = inlined_call_operand.<no memory space> [shape: f32[1,1], index: 5, kind: input, shape index: {}]
  %s6 = inlined_call_operand.hbm [shape: f32[1,1,128], index: 6, kind: output, shape index: {}]
  %s7 = sld [smem:[#allocation0]]
  $region34: #{tpu_custom_call.1} parent=0
    _
  %s9 = ssub.s32 1, %s7
  %s10 = scalar_select 0, %s9, %s7
  %11 = sst [smem:[#allocation2]] %s5
  $region1: #{tpu_custom_call.1} parent=0
    #allocation3 [shape = 'u8[512]{0}', space=vmem, size = 0x400, scoped, tag = 'output window, operand 0, single buffered']
    #allocation4 [shape = 's32[1]{0}', space=sflag, size = 0x4, scoped, tag = 'scoped memory for tpu_custom_call.1']
    %12 = vsyncpa [#allocation4], 0
    // Predicated region
    $region2: #{tpu_custom_call.1} parent=1 // pred_check
      _
    $region3: #{tpu_custom_call.1} parent=1 // pred_check_branch
      %14 = sbr.rel (0) target = $region5
    $region4: #{tpu_custom_call.1} parent=1 // pred_region
      _
    $region5: #{tpu_custom_call.1} parent=1 // pred_fallthru
      _
    // Predicated region
    $region6: #{tpu_custom_call.1} parent=1 // pred_check
      _
    $region7: #{tpu_custom_call.1} parent=1 // pred_check_branch
      %16 = sbr.rel (0) target = $region9
    $region8: #{tpu_custom_call.1} parent=1 // pred_region
      _
    $region9: #{tpu_custom_call.1} parent=1 // pred_fallthru
      _
    // Predicated region
    $region10: #{tpu_custom_call.1} parent=1 // pred_check
      _
    $region11: #{tpu_custom_call.1} parent=1 // pred_check_branch
      %18 = sbr.rel (0) target = $region13
    $region12: #{tpu_custom_call.1} parent=1 // pred_region
      _
    $region13: #{tpu_custom_call.1} parent=1 // pred_fallthru
      _
    // Predicated region
    $region14: #{tpu_custom_call.1} parent=1 // pred_check
      _
    $region15: #{tpu_custom_call.1} parent=1 // pred_check_branch
      %20 = sbr.rel (0) target = $region17
    $region16: #{tpu_custom_call.1} parent=1 // pred_region
      _
    $region17: #{tpu_custom_call.1} parent=1 // pred_fallthru
      _
    // Predicated region
    $region18: #{tpu_custom_call.1} parent=1 // pred_check
      _
    $region19: #{tpu_custom_call.1} parent=1 // pred_check_branch
      %22 = sbr.rel (0) target = $region21
    $region20: #{tpu_custom_call.1} parent=1 // pred_region
      _
    $region21: #{tpu_custom_call.1} parent=1 // pred_fallthru
      _
    // Predicated region
    $region22: #{tpu_custom_call.1} parent=1 // pred_check
      _
    $region23: #{tpu_custom_call.1} parent=1 // pred_check_branch
      %24 = sbr.rel (0) target = $region25
    $region24: #{tpu_custom_call.1} parent=1 // pred_region
      _
    $region25: #{tpu_custom_call.1} parent=1 // pred_fallthru
      _
    %v25 = vld [vmem:[%s0] sm:$0xff]
    %v26 = vld [vmem:[%s0 + $0x8] sm:$0xff]
    %v27 = vld [vmem:[%s0 + $0x10] sm:$0xff]
    %v28 = vld [vmem:[%s0 + $0x18] sm:$0xff]
    %v29 = vld [vmem:[%s0 + $0x20] sm:$0xff]
    %v30 = vld [vmem:[%s0 + $0x28] sm:$0xff]
    %v31 = vld [vmem:[%s0 + $0x30] sm:$0xff]
    %v32 = vld [vmem:[%s0 + $0x38] sm:$0xff]
    %v33 = vld [vmem:[%s0 + $0x40] sm:$0xff]
    %v34 = vld [vmem:[%s0 + $0x48] sm:$0xff]
    %v35 = vld [vmem:[%s0 + $0x50] sm:$0xff]
    %v36 = vld [vmem:[%s0 + $0x58] sm:$0xff]
    %v37 = vld [vmem:[%s0 + $0x60] sm:$0xff]
    %v38 = vld [vmem:[%s0 + $0x68] sm:$0xff]
    %v39 = vld [vmem:[%s0 + $0x70] sm:$0xff]
    %v40 = vld [vmem:[%s0 + $0x78] sm:$0xff]
    %v41 = vld [vmem:[%s1] sm:$0xff]
    %v42 = vld [vmem:[%s1 + $0x8] sm:$0xff]
    %v43 = vld [vmem:[%s1 + $0x10] sm:$0xff]
    %v44 = vld [vmem:[%s1 + $0x18] sm:$0xff]
    %v45 = vld [vmem:[%s1 + $0x20] sm:$0xff]
    %v46 = vld [vmem:[%s1 + $0x28] sm:$0xff]
    %v47 = vld [vmem:[%s1 + $0x30] sm:$0xff]
    %v48 = vld [vmem:[%s1 + $0x38] sm:$0xff]
    %v49 = vld [vmem:[%s1 + $0x40] sm:$0xff]
    %v50 = vld [vmem:[%s1 + $0x48] sm:$0xff]
    %v51 = vld [vmem:[%s1 + $0x50] sm:$0xff]
    %v52 = vld [vmem:[%s1 + $0x58] sm:$0xff]
    %v53 = vld [vmem:[%s1 + $0x60] sm:$0xff]
    %v54 = vld [vmem:[%s1 + $0x68] sm:$0xff]
    %v55 = vld [vmem:[%s1 + $0x70] sm:$0xff]
    %v56 = vld [vmem:[%s1 + $0x78] sm:$0xff]
    %73 = vrot.lane.b32.xlu0 %v41, 16
    %v74 = vpop.permute.xlu0 %73
    %75 = vrot.lane.b32.xlu0 %v42, 16
    %v76 = vpop.permute.xlu0 %75
    %77 = vrot.lane.b32.xlu0 %v43, 16
    %v78 = vpop.permute.xlu0 %77
    %79 = vrot.lane.b32.xlu0 %v44, 16
    %v80 = vpop.permute.xlu0 %79
    %81 = vrot.lane.b32.xlu0 %v45, 16
    %v82 = vpop.permute.xlu0 %81
    %83 = vrot.lane.b32.xlu0 %v46, 16
    %v84 = vpop.permute.xlu0 %83
    %85 = vrot.lane.b32.xlu0 %v47, 16
    %v86 = vpop.permute.xlu0 %85
    %87 = vrot.lane.b32.xlu0 %v48, 16
    %v88 = vpop.permute.xlu0 %87
    %89 = vrot.lane.b32.xlu0 %v49, 16
    %v90 = vpop.permute.xlu0 %89
    %91 = vrot.lane.b32.xlu0 %v50, 16
    %v92 = vpop.permute.xlu0 %91
    %93 = vrot.lane.b32.xlu0 %v51, 16
    %v94 = vpop.permute.xlu0 %93
    %95 = vrot.lane.b32.xlu0 %v52, 16
    %v96 = vpop.permute.xlu0 %95
    %97 = vrot.lane.b32.xlu0 %v53, 16
    %v98 = vpop.permute.xlu0 %97
    %99 = vrot.lane.b32.xlu0 %v54, 16
    %v100 = vpop.permute.xlu0 %99
    %101 = vrot.lane.b32.xlu0 %v55, 16
    %v102 = vpop.permute.xlu0 %101
    %103 = vrot.lane.b32.xlu0 %v56, 16
    %v104 = vpop.permute.xlu0 %103
    %vm121 = vcmask 130048
    %v122 = vsel %vm121, %v25, %v74
    %v123 = vsel %vm121, %v26, %v76
    %v124 = vsel %vm121, %v27, %v78
    %v125 = vsel %vm121, %v28, %v80
    %v126 = vsel %vm121, %v29, %v82
    %v127 = vsel %vm121, %v30, %v84
    %v128 = vsel %vm121, %v31, %v86
    %v129 = vsel %vm121, %v32, %v88
    %v130 = vsel %vm121, %v33, %v90
    %v131 = vsel %vm121, %v34, %v92
    %v132 = vsel %vm121, %v35, %v94
    %v133 = vsel %vm121, %v36, %v96
    %v134 = vsel %vm121, %v37, %v98
    %v135 = vsel %vm121, %v38, %v100
    %v136 = vsel %vm121, %v39, %v102
    %v137 = vsel %vm121, %v40, %v104
    %v138 = vld [vmem:[%s2] sm:$0xff]
    %v139 = vld [vmem:[%s2 + $0x8] sm:$0xff]
    %v140 = vld [vmem:[%s2 + $0x10] sm:$0xff]
    %v141 = vld [vmem:[%s3] sm:$0x1]
    %v143 = vlaneseq
    %v144 = vshrl.u32 %v143, 7
    %v145 = vsub.s32 0, %v144
    %v146 = vrot.slane %v141, %v145
    %vm148 = vcmask 195584
    %v150 = vsel %vm148, %v122, 0
    %v153 = vsel %vm148, %v123, 0
    %v156 = vsel %vm148, %v124, 0
    %v159 = vsel %vm148, %v125, 0
    %v162 = vsel %vm148, %v126, 0
    %v165 = vsel %vm148, %v127, 0
    %v168 = vsel %vm148, %v128, 0
    %v171 = vsel %vm148, %v129, 0
    %v174 = vsel %vm148, %v130, 0
    %v177 = vsel %vm148, %v131, 0
    %v180 = vsel %vm148, %v132, 0
    %v183 = vsel %vm148, %v133, 0
    %v186 = vsel %vm148, %v134, 0
    %v189 = vsel %vm148, %v135, 0
    %v192 = vsel %vm148, %v136, 0
    %v195 = vsel %vm148, %v137, 0
    %197 = vmatprep.subr.mxu0 0.0
    %198 = vmatpush1.msra.mxu0 %v138
    %199 = vmatprep.subr.mxu0 0.0
    %200 = vmatpush1.msra.mxu0 %v139
    %201 = vmatprep.subr.mxu0 0.0
    %202 = vmatpush1.msra.mxu0 %v140
    %203 = vmatprep.subr.mxu0 0.0
    %204 = vmatpush1.msra.mxu0 0.0
    %205 = vmatprep.subr.mxu0 0.0
    %206 = vmatpush1.msra.mxu0 0.0
    %207 = vmatprep.subr.mxu0 0.0
    %208 = vmatpush1.msra.mxu0 0.0
    %209 = vmatprep.subr.mxu0 0.0
    %210 = vmatpush1.msra.mxu0 0.0
    %211 = vmatprep.subr.mxu0 0.0
    %212 = vmatpush1.msra.mxu0 0.0
    %213 = vmatprep.subr.mxu0 0.0
    %214 = vmatpush1.msra.mxu0 0.0
    %215 = vmatprep.subr.mxu0 0.0
    %216 = vmatpush1.msra.mxu0 0.0
    %217 = vmatprep.subr.mxu0 0.0
    %218 = vmatpush1.msra.mxu0 0.0
    %219 = vmatprep.subr.mxu0 0.0
    %220 = vmatpush1.msra.mxu0 0.0
    %221 = vmatprep.subr.mxu0 0.0
    %222 = vmatpush1.msra.mxu0 0.0
    %223 = vmatprep.subr.mxu0 0.0
    %224 = vmatpush1.msra.mxu0 0.0
    %225 = vmatprep.subr.mxu0 0.0
    %226 = vmatpush1.msra.mxu0 0.0
    %227 = vmatprep.subr.mxu0 0.0
    %228 = vmatpush1.msra.mxu0 0.0
    %229 = vmatprep.subr.mxu0 0.0
    %230 = vmatpush1.msra.mxu0 0.0
    %231 = vmatprep.subr.mxu0 0.0
    %232 = vmatpush1.msra.mxu0 0.0
    %233 = vmatprep.subr.mxu0 0.0
    %234 = vmatpush1.msra.mxu0 0.0
    %235 = vmatprep.subr.mxu0 0.0
    %236 = vmatpush1.msra.mxu0 0.0
    %237 = vmatprep.subr.mxu0 0.0
    %238 = vmatpush1.msra.mxu0 0.0
    %239 = vmatprep.subr.mxu0 0.0
    %240 = vmatpush1.msra.mxu0 0.0
    %241 = vmatprep.subr.mxu0 0.0
    %242 = vmatpush1.msra.mxu0 0.0
    %243 = vmatprep.subr.mxu0 0.0
    %244 = vmatpush1.msra.mxu0 0.0
    %245 = vmatprep.subr.mxu0 0.0
    %246 = vmatpush1.msra.mxu0 0.0
    %247 = vmatprep.subr.mxu0 0.0
    %248 = vmatpush1.msra.mxu0 0.0
    %249 = vmatprep.subr.mxu0 0.0
    %250 = vmatpush1.msra.mxu0 0.0
    %251 = vmatprep.subr.mxu0 0.0
    %252 = vmatpush1.msra.mxu0 0.0
    %253 = vmatprep.subr.mxu0 0.0
    %254 = vmatpush1.msra.mxu0 0.0
    %255 = vmatprep.subr.mxu0 0.0
    %256 = vmatpush1.msra.mxu0 0.0
    %257 = vmatprep.subr.mxu0 0.0
    %258 = vmatpush1.msra.mxu0 0.0
    %259 = vmatprep.subr.mxu0 0.0
    %260 = vmatpush1.msra.mxu0 0.0
    %261 = vmatprep.mubr.f32.mxu0 0.0
    %262 = vmatmul.mubr.f32.gmra.mrb[0].mxu0 %v150
    %v263 = vpop.f32.mrb[0].mxu0
    %v264 = vadd.f32 %v146, %v263
    %v265 = vpop.f32.mrb[0].mxu0
    %266 = vmatprep.mubr.f32.mxu0 0.0
    %267 = vmatmul.mubr.f32.gmra.mrb[0].mxu0 %v153
    %v268 = vpop.f32.mrb[0].mxu0
    %v269 = vadd.f32 %v146, %v268
    %v270 = vpop.f32.mrb[0].mxu0
    %271 = vmatprep.mubr.f32.mxu0 0.0
    %272 = vmatmul.mubr.f32.gmra.mrb[0].mxu0 %v156
    %v273 = vpop.f32.mrb[0].mxu0
    %v274 = vadd.f32 %v146, %v273
    %v275 = vpop.f32.mrb[0].mxu0
    %276 = vmatprep.mubr.f32.mxu0 0.0
    %277 = vmatmul.mubr.f32.gmra.mrb[0].mxu0 %v159
    %v278 = vpop.f32.mrb[0].mxu0
    %v279 = vadd.f32 %v146, %v278
    %v280 = vpop.f32.mrb[0].mxu0
    %281 = vmatprep.mubr.f32.mxu0 0.0
    %282 = vmatmul.mubr.f32.gmra.mrb[0].mxu0 %v162
    %v283 = vpop.f32.mrb[0].mxu0
    %v284 = vadd.f32 %v146, %v283
    %v285 = vpop.f32.mrb[0].mxu0
    %286 = vmatprep.mubr.f32.mxu0 0.0
    %287 = vmatmul.mubr.f32.gmra.mrb[0].mxu0 %v165
    %v288 = vpop.f32.mrb[0].mxu0
    %v289 = vadd.f32 %v146, %v288
    %v290 = vpop.f32.mrb[0].mxu0
    %291 = vmatprep.mubr.f32.mxu0 0.0
    %292 = vmatmul.mubr.f32.gmra.mrb[0].mxu0 %v168
    %v293 = vpop.f32.mrb[0].mxu0
    %v294 = vadd.f32 %v146, %v293
    %v295 = vpop.f32.mrb[0].mxu0
    %296 = vmatprep.mubr.f32.mxu0 0.0
    %297 = vmatmul.mubr.f32.gmra.mrb[0].mxu0 %v171
    %v298 = vpop.f32.mrb[0].mxu0
    %v299 = vadd.f32 %v146, %v298
    %v300 = vpop.f32.mrb[0].mxu0
    %301 = vmatprep.mubr.f32.mxu0 0.0
    %302 = vmatmul.mubr.f32.gmra.mrb[0].mxu0 %v174
    %v303 = vpop.f32.mrb[0].mxu0
    %v304 = vadd.f32 %v146, %v303
    %v305 = vpop.f32.mrb[0].mxu0
    %306 = vmatprep.mubr.f32.mxu0 0.0
    %307 = vmatmul.mubr.f32.gmra.mrb[0].mxu0 %v177
    %v308 = vpop.f32.mrb[0].mxu0
    %v309 = vadd.f32 %v146, %v308
    %v310 = vpop.f32.mrb[0].mxu0
    %311 = vmatprep.mubr.f32.mxu0 0.0
    %312 = vmatmul.mubr.f32.gmra.mrb[0].mxu0 %v180
    %v313 = vpop.f32.mrb[0].mxu0
    %v314 = vadd.f32 %v146, %v313
    %v315 = vpop.f32.mrb[0].mxu0
    %316 = vmatprep.mubr.f32.mxu0 0.0
    %317 = vmatmul.mubr.f32.gmra.mrb[0].mxu0 %v183
    %v318 = vpop.f32.mrb[0].mxu0
    %v319 = vadd.f32 %v146, %v318
    %v320 = vpop.f32.mrb[0].mxu0
    %321 = vmatprep.mubr.f32.mxu0 0.0
    %322 = vmatmul.mubr.f32.gmra.mrb[0].mxu0 %v186
    %v323 = vpop.f32.mrb[0].mxu0
    %v324 = vadd.f32 %v146, %v323
    %v325 = vpop.f32.mrb[0].mxu0
    %326 = vmatprep.mubr.f32.mxu0 0.0
    %327 = vmatmul.mubr.f32.gmra.mrb[0].mxu0 %v189
    %v328 = vpop.f32.mrb[0].mxu0
    %v329 = vadd.f32 %v146, %v328
    %v330 = vpop.f32.mrb[0].mxu0
    %331 = vmatprep.mubr.f32.mxu0 0.0
    %332 = vmatmul.mubr.f32.gmra.mrb[0].mxu0 %v192
    %v333 = vpop.f32.mrb[0].mxu0
    %v334 = vadd.f32 %v146, %v333
    %v335 = vpop.f32.mrb[0].mxu0
    %336 = vmatprep.mubr.f32.mxu0 0.0
    %337 = vmatmul.mubr.f32.gmra.mrb[0].mxu0 %v195
    %v338 = vpop.f32.mrb[0].mxu0
    %v339 = vadd.f32 %v146, %v338
    %v340 = vpop.f32.mrb[0].mxu0
    %341 = vdwg.mxu0
    %v342 = vtanh.pop %v264
    %v343 = vtanh.pop %v269
    %v344 = vtanh.pop %v274
    %v345 = vtanh.pop %v279
    %v346 = vtanh.pop %v284
    %v347 = vtanh.pop %v289
    %v348 = vtanh.pop %v294
    %v349 = vtanh.pop %v299
    %v350 = vtanh.pop %v304
    %v351 = vtanh.pop %v309
    %v352 = vtanh.pop %v314
    %v353 = vtanh.pop %v319
    %v354 = vtanh.pop %v324
    %v355 = vtanh.pop %v329
    %v356 = vtanh.pop %v334
    %v357 = vtanh.pop %v339
    %v358 = vld [vmem:[%s4] sm:$0x1]
    %v360 = vlaneseq
    %v361 = vshrl.u32 %v360, 7
    %v362 = vsub.s32 0, %v361
    %v363 = vrot.slane %v358, %v362
    %vm364 = vcmask 408576
    %v365 = vsel %vm364, %v363, 0
    %v368 = vsel %vm364, %v342, 0
    %v371 = vsel %vm364, %v343, 0
    %v374 = vsel %vm364, %v344, 0
    %v377 = vsel %vm364, %v345, 0
    %v380 = vsel %vm364, %v346, 0
    %v383 = vsel %vm364, %v347, 0
    %v386 = vsel %vm364, %v348, 0
    %v389 = vsel %vm364, %v349, 0
    %v392 = vsel %vm364, %v350, 0
    %v395 = vsel %vm364, %v351, 0
    %v398 = vsel %vm364, %v352, 0
    %v401 = vsel %vm364, %v353, 0
    %v404 = vsel %vm364, %v354, 0
    %v407 = vsel %vm364, %v355, 0
    %v410 = vsel %vm364, %v356, 0
    %v413 = vsel %vm364, %v357, 0
    %415 = vmatprep.subr.mxu0 0.0
    %416 = vmatpush1.xpose.msra.mxu0 %v368
    %417 = vmatprep.subr.mxu0 0.0
    %418 = vmatpush1.xpose.msra.mxu0 %v371
    %419 = vmatprep.subr.mxu0 0.0
    %420 = vmatpush1.xpose.msra.mxu0 %v374
    %421 = vmatprep.subr.mxu0 0.0
    %422 = vmatpush1.xpose.msra.mxu0 %v377
    %423 = vmatprep.subr.mxu0 0.0
    %424 = vmatpush1.xpose.msra.mxu0 %v380
    %425 = vmatprep.subr.mxu0 0.0
    %426 = vmatpush1.xpose.msra.mxu0 %v383
    %427 = vmatprep.subr.mxu0 0.0
    %428 = vmatpush1.xpose.msra.mxu0 %v386
    %429 = vmatprep.subr.mxu0 0.0
    %430 = vmatpush1.xpose.msra.mxu0 %v389
    %431 = vmatprep.subr.mxu0 0.0
    %432 = vmatpush1.xpose.msra.mxu0 %v392
    %433 = vmatprep.subr.mxu0 0.0
    %434 = vmatpush1.xpose.msra.mxu0 %v395
    %435 = vmatprep.subr.mxu0 0.0
    %436 = vmatpush1.xpose.msra.mxu0 %v398
    %437 = vmatprep.subr.mxu0 0.0
    %438 = vmatpush1.xpose.msra.mxu0 %v401
    %439 = vmatprep.subr.mxu0 0.0
    %440 = vmatpush1.xpose.msra.mxu0 %v404
    %441 = vmatprep.subr.mxu0 0.0
    %442 = vmatpush1.xpose.msra.mxu0 %v407
    %443 = vmatprep.subr.mxu0 0.0
    %444 = vmatpush1.xpose.msra.mxu0 %v410
    %445 = vmatprep.subr.mxu0 0.0
    %446 = vmatpush1.xpose.msra.mxu0 %v413
    %447 = vmatprep.subr.mxu0 0.0
    %448 = vmatpush1.xpose.msra.mxu0 0.0
    %449 = vmatprep.subr.mxu0 0.0
    %450 = vmatpush1.xpose.msra.mxu0 0.0
    %451 = vmatprep.subr.mxu0 0.0
    %452 = vmatpush1.xpose.msra.mxu0 0.0
    %453 = vmatprep.subr.mxu0 0.0
    %454 = vmatpush1.xpose.msra.mxu0 0.0
    %455 = vmatprep.subr.mxu0 0.0
    %456 = vmatpush1.xpose.msra.mxu0 0.0
    %457 = vmatprep.subr.mxu0 0.0
    %458 = vmatpush1.xpose.msra.mxu0 0.0
    %459 = vmatprep.subr.mxu0 0.0
    %460 = vmatpush1.xpose.msra.mxu0 0.0
    %461 = vmatprep.subr.mxu0 0.0
    %462 = vmatpush1.xpose.msra.mxu0 0.0
    %463 = vmatprep.subr.mxu0 0.0
    %464 = vmatpush1.xpose.msra.mxu0 0.0
    %465 = vmatprep.subr.mxu0 0.0
    %466 = vmatpush1.xpose.msra.mxu0 0.0
    %467 = vmatprep.subr.mxu0 0.0
    %468 = vmatpush1.xpose.msra.mxu0 0.0
    %469 = vmatprep.subr.mxu0 0.0
    %470 = vmatpush1.xpose.msra.mxu0 0.0
    %471 = vmatprep.subr.mxu0 0.0
    %472 = vmatpush1.xpose.msra.mxu0 0.0
    %473 = vmatprep.subr.mxu0 0.0
    %474 = vmatpush1.xpose.msra.mxu0 0.0
    %475 = vmatprep.subr.mxu0 0.0
    %476 = vmatpush1.xpose.msra.mxu0 0.0
    %477 = vmatprep.subr.mxu0 0.0
    %478 = vmatpush1.xpose.msra.mxu0 0.0
    %479 = vmatprep.mubr.f32.mxu0 0.0
    %480 = vmatmul.mubr.f32.gmra.mrb[0].mxu0 %v365
    %v481 = vpop.f32.mrb[0].mxu0
    %v482 = vadd.f32 0.0, %v481
    %v483 = vpop.f32.mrb[0].mxu0
    %484 = vdwg.mxu0
    %s485 = sld [smem:[#allocation2]]
    %v486 = vstv %s485
    %v487 = vadd.f32 %v482, %v486
    %v488 = vxor.u32 %v487, 2147483648
    %v489 = vmul.f32 %v488, 1.442695
    %v490 = vpow.pop %v489
    %v491 = vadd.f32 %v490, 1.0
    %v492 = vrcp.pop %v491
    %v493 = vmul.f32 1.0, %v492
    %494 = vst [vmem:[#allocation3] sm:$0x1] %v493
    // Predicated region
    $region26: #{tpu_custom_call.1} parent=1 // pred_check
      _
    $region27: #{tpu_custom_call.1} parent=1 // pred_check_branch
      %496 = sbr.rel (0) target = $region29
    $region28: #{tpu_custom_call.1} parent=1 // pred_region
      %s498 = ssub.s32 16, 16
      %499 = vsyncadd [#allocation4], %s498
      %s501 = sshll.u32 [#allocation3], 4
      %s502 = int_to_ptr.vmem [resolvable:$true] %s501
      %504 = dma.vmem_to_hbm [thread:$0]  %s502, 16, %s6, [#allocation4]
    $region29: #{tpu_custom_call.1} parent=1 // pred_fallthru
      _
    // Predicated region
    $region30: #{tpu_custom_call.1} parent=1 // pred_check
      _
    $region31: #{tpu_custom_call.1} parent=1 // pred_check_branch
      %506 = sbr.rel (0) target = $region33
    $region32: #{tpu_custom_call.1} parent=1 // pred_region
      %507 = dma.done [#allocation4], 16
    $region33: #{tpu_custom_call.1} parent=1 // pred_fallthru
      _
    %508 = vsyncpa [#allocation4], 1

</llo_original>
